<compile_context>
chip_gen: v6e
topology: v6e:2x2x1
jax: 0.10.0
libtpu: 0.0.40
codegen_flags: <defaults>
</compile_context>

<pallas_src>
import jax
import jax.numpy as jnp
from jax.experimental import pallas as pl
from jax.experimental.pallas import tpu as pltpu


# 784 -> 512 -> 256 -> 128 -> 64 -> 16 -> 3 -> 16 -> 64 -> 128 -> 256 -> 512 -> 784
LAYER_DIMS = [28 * 28, 512, 256, 128, 64, 16, 3, 16, 64, 128, 256, 512, 28 * 28]
N_ENC = 6
D_IN = LAYER_DIMS[0]      # 784
D_OUT = LAYER_DIMS[-1]    # 784
LAT_PAD = 128             # latent dim 3, zero-padded to one full lane group


def _round_up(x, m):
    return (x + m - 1) // m * m


# ----------------------------------------------------------------------------
# Kernel: the whole autoencoder is two matmuls + bias + sigmoid.
# ----------------------------------------------------------------------------
def _autoencoder_kernel(x_ref, w_enc_ref, b_enc_ref, w_dec_ref, b_dec_ref, o_ref):
    # (tb, 784) @ (784, 128) -> (tb, 128); latent columns 3..127 are exact zeros.
    lat = jnp.dot(x_ref[...], w_enc_ref[...], preferred_element_type=jnp.float32)
    lat = lat + b_enc_ref[...]
    # (tb, 128) @ (128, 784) -> (tb, 784); zero latent rows contribute nothing.
    out = jnp.dot(lat, w_dec_ref[...], preferred_element_type=jnp.float32)
    out = jax.nn.sigmoid(out + b_dec_ref[...])
    o_ref[...] = out.astype(o_ref.dtype)


# ----------------------------------------------------------------------------
# Parameter construction / preparation.
# ----------------------------------------------------------------------------
def init_params(key):
    """Deterministic init mimicking nn.Linear's uniform(+-1/sqrt(fan_in)), f32."""
    params = []
    for d_in, d_out in zip(LAYER_DIMS[:-1], LAYER_DIMS[1:]):
        key, kw, kb = jax.random.split(key, 3)
        bound = 1.0 / jnp.sqrt(jnp.float32(d_in))
        w = jax.random.uniform(kw, (d_in, d_out), jnp.float32, -bound, bound)
        b = jax.random.uniform(kb, (d_out,), jnp.float32, -bound, bound)
        params.append((w, b))
    return params


def _collapse(layer_params):
    """Fold a chain of Linear layers into a single (W_total, b_total) in f32."""
    w_tot, b_tot = layer_params[0]
    for w, b in layer_params[1:]:
        w_tot = jnp.dot(w_tot, w, precision=jax.lax.Precision.HIGHEST)
        b_tot = jnp.dot(b_tot, w, precision=jax.lax.Precision.HIGHEST) + b
    return w_tot, b_tot


def prepare_params(params):
    """Collapse encoder/decoder chains and pad the rank-3 latent dim to 128."""
    w_enc, b_enc = _collapse(params[:N_ENC])    # (784, 3), (3,)
    w_dec, b_dec = _collapse(params[N_ENC:])    # (3, 784), (784,)

    w_enc_p = jnp.zeros((D_IN, LAT_PAD), jnp.float32).at[:, : w_enc.shape[1]].set(w_enc)
    b_enc_p = jnp.zeros((1, LAT_PAD), jnp.float32).at[0, : b_enc.shape[0]].set(b_enc)
    w_dec_p = jnp.zeros((LAT_PAD, D_OUT), jnp.float32).at[: w_dec.shape[0], :].set(w_dec)
    b_dec_p = b_dec.reshape(1, D_OUT).astype(jnp.float32)
    return w_enc_p, b_enc_p, w_dec_p, b_dec_p


# ----------------------------------------------------------------------------
# Forward pass (jit-compiled wrapper around one pallas_call).
# ----------------------------------------------------------------------------
def deep_linear_autoencoder(x, prepared):
    w_enc_p, b_enc_p, w_dec_p, b_dec_p = prepared
    batch, d_in = x.shape
    assert d_in == D_IN

    # Batch tiling:
    #   batch <= 16        : one tile (latency-bound; nothing to parallelize).
    #   16 < batch <= 1024 : exactly two tiles -> both v7x TensorCores busy.
    #   batch > 1024       : 512-row tiles (amortize step overhead, M >= 256).
    if batch <= 16:
        batch_p = _round_up(batch, 8)
        tb = batch_p
    elif batch <= 1024:
        batch_p = _round_up(batch, 16)
        tb = batch_p // 2
    else:
        tb = 512
        batch_p = _round_up(batch, tb)
    n_tiles = batch_p // tb

    x_in = x.astype(jnp.float32)
    if batch_p != batch:
        x_in = jnp.pad(x_in, ((0, batch_p - batch), (0, 0)))

    def _full(a):
        # Full-array, grid-invariant block -> stays VMEM resident across tiles.
        return pl.BlockSpec(a.shape, lambda i: (0, 0))

    out = pl.pallas_call(
        _autoencoder_kernel,
        out_shape=jax.ShapeDtypeStruct((batch_p, D_OUT), jnp.float32),
        grid=(n_tiles,),
        in_specs=[
            pl.BlockSpec((tb, D_IN), lambda i: (i, 0)),   # x: unpadded 784 cols
            _full(w_enc_p),
            _full(b_enc_p),
            _full(w_dec_p),
            _full(b_dec_p),
        ],
        out_specs=pl.BlockSpec((tb, D_OUT), lambda i: (i, 0)),
        compiler_params=pltpu.CompilerParams(
            dimension_semantics=("parallel",)),
        # NOTE: set vmem_limit_bytes here if tb is ever pushed past 512 (v5e's
        # 16 MiB scoped-VMEM default becomes the binding constraint first).
    )(x_in, w_enc_p, b_enc_p, w_dec_p, b_dec_p)

    if batch_p != batch:
        out = out[:batch]
    return out


forward = jax.jit(deep_linear_autoencoder)


# ----------------------------------------------------------------------------
# Pure-JAX references.
# ----------------------------------------------------------------------------
def _reference_sequential_f32(x, params):
    """PyTorch-equivalent layer-by-layer forward in f32."""
    h = x
    for w, b in params:
        h = jnp.dot(h, w, precision=jax.lax.Precision.HIGHEST) + b
    return jax.nn.sigmoid(h)


def _reference_collapsed(x, prepared):
    """Same collapsed math as the kernel, computed with plain jnp."""
    w_enc_p, b_enc_p, w_dec_p, b_dec_p = prepared
    lat = jnp.dot(x, w_enc_p, precision=jax.lax.Precision.HIGHEST) + b_enc_p
    pre = jnp.dot(lat, w_dec_p, precision=jax.lax.Precision.HIGHEST) + b_dec_p
    return jax.nn.sigmoid(pre)


if __name__ == "__main__":
    key = jax.random.PRNGKey(0)
    k_params, k_x = jax.random.split(key)

    params = init_params(k_params)
    prepared = prepare_params(params)

    batch = 8
    x = jax.random.uniform(k_x, (batch, D_IN), jnp.float32)

    out = jax.block_until_ready(forward(x, prepared))
    assert out.shape == (batch, D_OUT)

    # Tight check against the identical collapsed-f32 math.
    ref_c = _reference_collapsed(x, prepared)
    assert jnp.allclose(out, ref_c, atol=1e-3, rtol=1e-3)
    # Check against the full layer-by-layer f32 (PyTorch-equivalent) forward.
    ref_s = _reference_sequential_f32(x, params)
    assert jnp.allclose(out, ref_s, atol=2e-3, rtol=2e-3)

    print("KERNEL_OK")
</pallas_src>

<mosaic_0001>
module attributes {stable_mosaic.version = 11 : i64} {
  func.func @_autoencoder_kernel(%arg0: i32, %arg1: memref<8x784xf32, #tpu.memory_space<vmem>>, %arg2: memref<784x128xf32, #tpu.memory_space<vmem>>, %arg3: memref<1x128xf32, #tpu.memory_space<vmem>>, %arg4: memref<128x784xf32, #tpu.memory_space<vmem>>, %arg5: memref<1x784xf32, #tpu.memory_space<vmem>>, %arg6: memref<8x784xf32, #tpu.memory_space<vmem>>) attributes {dimension_semantics = [#tpu.dimension_semantics<parallel>], iteration_bounds = array<i64: 1>, scalar_prefetch = 0 : i64, scratch_operands = 0 : i64, tpu.core_type = #tpu.core_type<tc>, window_params = [{transform_indices = @transform_0, window_bounds = array<i64: 8, 784>}, {pipeline_mode = #tpu.pipeline_mode<synchronous>, transform_indices = @transform_1, window_bounds = array<i64: 784, 128>}, {pipeline_mode = #tpu.pipeline_mode<synchronous>, transform_indices = @transform_2, window_bounds = array<i64: 1, 128>}, {pipeline_mode = #tpu.pipeline_mode<synchronous>, transform_indices = @transform_3, window_bounds = array<i64: 128, 784>}, {pipeline_mode = #tpu.pipeline_mode<synchronous>, transform_indices = @transform_4, window_bounds = array<i64: 1, 784>}, {transform_indices = @transform_5, window_bounds = array<i64: 8, 784>}]} {
    %c0 = arith.constant 0 : index
    %c0_0 = arith.constant 0 : index
    %0 = vector.load %arg1[%c0, %c0_0] : memref<8x784xf32, #tpu.memory_space<vmem>>, vector<8x784xf32>
    %c0_1 = arith.constant 0 : index
    %c0_2 = arith.constant 0 : index
    %1 = vector.load %arg2[%c0_1, %c0_2] : memref<784x128xf32, #tpu.memory_space<vmem>>, vector<784x128xf32>
    %cst = arith.constant dense<0.000000e+00> : vector<8x128xf32>
    %2 = tpu.matmul %0, %1, %cst {dimension_numbers = #tpu.dot_dimension_numbers<[1], [0], [0], [1], [0, 0, 1, 1], [], []>} : vector<8x784xf32>, vector<784x128xf32>, vector<8x128xf32> -> vector<8x128xf32>
    %c0_3 = arith.constant 0 : index
    %c0_4 = arith.constant 0 : index
    %3 = vector.load %arg3[%c0_3, %c0_4] : memref<1x128xf32, #tpu.memory_space<vmem>>, vector<1x128xf32>
    %4 = vector.broadcast %3 : vector<1x128xf32> to vector<8x128xf32>
    %5 = arith.addf %2, %4 : vector<8x128xf32>
    %c0_5 = arith.constant 0 : index
    %c0_6 = arith.constant 0 : index
    %6 = vector.load %arg4[%c0_5, %c0_6] : memref<128x784xf32, #tpu.memory_space<vmem>>, vector<128x784xf32>
    %cst_7 = arith.constant dense<0.000000e+00> : vector<8x784xf32>
    %7 = tpu.matmul %5, %6, %cst_7 {dimension_numbers = #tpu.dot_dimension_numbers<[1], [0], [0], [1], [0, 0, 1, 1], [], []>} : vector<8x128xf32>, vector<128x784xf32>, vector<8x784xf32> -> vector<8x784xf32>
    %c0_8 = arith.constant 0 : index
    %c0_9 = arith.constant 0 : index
    %8 = vector.load %arg5[%c0_8, %c0_9] : memref<1x784xf32, #tpu.memory_space<vmem>>, vector<1x784xf32>
    %9 = vector.broadcast %8 : vector<1x784xf32> to vector<8x784xf32>
    %10 = arith.addf %7, %9 : vector<8x784xf32>
    %11 = arith.negf %10 : vector<8x784xf32>
    %12 = math.exp %11 : vector<8x784xf32>
    %cst_10 = arith.constant 1.000000e+00 : f32
    %13 = vector.broadcast %cst_10 : f32 to vector<8x784xf32>
    %14 = arith.addf %13, %12 : vector<8x784xf32>
    %15 = arith.divf %13, %14 : vector<8x784xf32>
    %c0_11 = arith.constant 0 : index
    %c0_12 = arith.constant 0 : index
    %16 = vector.load %arg6[%c0_11, %c0_12] : memref<8x784xf32, #tpu.memory_space<vmem>>, vector<8x784xf32>
    tpu.vector_store %arg6[%c0_11, %c0_12], %15 {strides = array<i32>} : memref<8x784xf32, #tpu.memory_space<vmem>>, vector<8x784xf32>,
    return
  }
  func.func @transform_0(%arg0: i32) -> (i32, i32) {
    %c0_i32 = arith.constant 0 : i32
    %c0_i32_0 = arith.constant 0 : i32
    return %arg0, %c0_i32 : i32, i32
  }
  func.func @transform_1(%arg0: i32) -> (i32, i32) {
    %c0_i32 = arith.constant 0 : i32
    %c0_i32_0 = arith.constant 0 : i32
    %c0_i32_1 = arith.constant 0 : i32
    return %c0_i32, %c0_i32_0 : i32, i32
  }
  func.func @transform_2(%arg0: i32) -> (i32, i32) {
    %c0_i32 = arith.constant 0 : i32
    %c0_i32_0 = arith.constant 0 : i32
    %c0_i32_1 = arith.constant 0 : i32
    return %c0_i32, %c0_i32_0 : i32, i32
  }
  func.func @transform_3(%arg0: i32) -> (i32, i32) {
    %c0_i32 = arith.constant 0 : i32
    %c0_i32_0 = arith.constant 0 : i32
    %c0_i32_1 = arith.constant 0 : i32
    return %c0_i32, %c0_i32_0 : i32, i32
  }
  func.func @transform_4(%arg0: i32) -> (i32, i32) {
    %c0_i32 = arith.constant 0 : i32
    %c0_i32_0 = arith.constant 0 : i32
    %c0_i32_1 = arith.constant 0 : i32
    return %c0_i32, %c0_i32_0 : i32, i32
  }
  func.func @transform_5(%arg0: i32) -> (i32, i32) {
    %c0_i32 = arith.constant 0 : i32
    %c0_i32_0 = arith.constant 0 : i32
    return %arg0, %c0_i32 : i32, i32
  }
}

</mosaic_0001>

<llo_original>
// kernel: deep_linear_autoencoder.1
$region0: #{deep_linear_autoencoder.1}
  #allocation0 [shape = 'u32[]', space=smem, size = 0x4, offset = 0x4, fixed_abs, tag = 'smem constant byte address 0x4 - core index']
  #allocation1 [shape = 'u32[144,128]{1,0:T(1,128)}', space=vmem, size = 0x12000, scoped, tag = 'internal scratch']
  %s0 = inlined_call_operand.vmem [shape: f32[8,784], index: 0, kind: input, shape index: {}]
  %s1 = inlined_call_operand.vmem [shape: f32[784,128], index: 1, kind: input, shape index: {}]
  %s2 = inlined_call_operand.vmem [shape: f32[1,128], index: 2, kind: input, shape index: {}]
  %s3 = inlined_call_operand.vmem [shape: f32[128,784], index: 3, kind: input, shape index: {}]
  %s4 = inlined_call_operand.vmem [shape: f32[1,784], index: 4, kind: input, shape index: {}]
  %s5 = inlined_call_operand.hbm [shape: f32[8,784], index: 5, kind: output, shape index: {}]
  %s6 = sld [smem:[#allocation0]]
  $region30: #{deep_linear_autoencoder.1} parent=0
    _
  %s8 = ssub.s32 1, %s6
  %s9 = scalar_select 0, %s8, %s6
  $region1: #{deep_linear_autoencoder.1} parent=0
    #allocation2 [shape = 'u8[28672]{0}', space=vmem, size = 0x7000, scoped, tag = 'output window, operand 0, single buffered']
    #allocation3 [shape = 's32[1]{0}', space=sflag, size = 0x4, scoped, tag = 'scoped memory for deep_linear_autoencoder.1']
    %10 = vsyncpa [#allocation3], 0
    // Predicated region
    $region2: #{deep_linear_autoencoder.1} parent=1 // pred_check
      _
    $region3: #{deep_linear_autoencoder.1} parent=1 // pred_check_branch
      %12 = sbr.rel (0) target = $region5
    $region4: #{deep_linear_autoencoder.1} parent=1 // pred_region
      _
    $region5: #{deep_linear_autoencoder.1} parent=1 // pred_fallthru
      _
    // Predicated region
    $region6: #{deep_linear_autoencoder.1} parent=1 // pred_check
      _
    $region7: #{deep_linear_autoencoder.1} parent=1 // pred_check_branch
      %14 = sbr.rel (0) target = $region9
    $region8: #{deep_linear_autoencoder.1} parent=1 // pred_region
      _
    $region9: #{deep_linear_autoencoder.1} parent=1 // pred_fallthru
      _
    // Predicated region
    $region10: #{deep_linear_autoencoder.1} parent=1 // pred_check
      _
    $region11: #{deep_linear_autoencoder.1} parent=1 // pred_check_branch
      %16 = sbr.rel (0) target = $region13
    $region12: #{deep_linear_autoencoder.1} parent=1 // pred_region
      _
    $region13: #{deep_linear_autoencoder.1} parent=1 // pred_fallthru
      _
    // Predicated region
    $region14: #{deep_linear_autoencoder.1} parent=1 // pred_check
      _
    $region15: #{deep_linear_autoencoder.1} parent=1 // pred_check_branch
      %18 = sbr.rel (0) target = $region17
    $region16: #{deep_linear_autoencoder.1} parent=1 // pred_region
      _
    $region17: #{deep_linear_autoencoder.1} parent=1 // pred_fallthru
      _
    // Predicated region
    $region18: #{deep_linear_autoencoder.1} parent=1 // pred_check
      _
    $region19: #{deep_linear_autoencoder.1} parent=1 // pred_check_branch
      %20 = sbr.rel (0) target = $region21
    $region20: #{deep_linear_autoencoder.1} parent=1 // pred_region
      _
    $region21: #{deep_linear_autoencoder.1} parent=1 // pred_fallthru
      _
    %v21 = vld [vmem:[%s0] sm:$0xff]
    %v22 = vld [vmem:[%s0 + $0x8] sm:$0xff]
    %v23 = vld [vmem:[%s0 + $0x10] sm:$0xff]
    %v24 = vld [vmem:[%s0 + $0x18] sm:$0xff]
    %v25 = vld [vmem:[%s0 + $0x20] sm:$0xff]
    %v26 = vld [vmem:[%s0 + $0x28] sm:$0xff]
    %v27 = vld [vmem:[%s0 + $0x30] sm:$0xff]
    %v28 = vld [vmem:[%s1] sm:$0xff]
    %v29 = vld [vmem:[%s1 + $0x8] sm:$0xff]
    %v30 = vld [vmem:[%s1 + $0x10] sm:$0xff]
    %v31 = vld [vmem:[%s1 + $0x18] sm:$0xff]
    %v32 = vld [vmem:[%s1 + $0x20] sm:$0xff]
    %v33 = vld [vmem:[%s1 + $0x28] sm:$0xff]
    %v34 = vld [vmem:[%s1 + $0x30] sm:$0xff]
    %v35 = vld [vmem:[%s1 + $0x38] sm:$0xff]
    %v36 = vld [vmem:[%s1 + $0x40] sm:$0xff]
    %v37 = vld [vmem:[%s1 + $0x48] sm:$0xff]
    %v38 = vld [vmem:[%s1 + $0x50] sm:$0xff]
    %v39 = vld [vmem:[%s1 + $0x58] sm:$0xff]
    %v40 = vld [vmem:[%s1 + $0x60] sm:$0xff]
    %v41 = vld [vmem:[%s1 + $0x68] sm:$0xff]
    %v42 = vld [vmem:[%s1 + $0x70] sm:$0xff]
    %v43 = vld [vmem:[%s1 + $0x78] sm:$0xff]
    %v44 = vld [vmem:[%s1 + $0x80] sm:$0xff]
    %v45 = vld [vmem:[%s1 + $0x88] sm:$0xff]
    %v46 = vld [vmem:[%s1 + $0x90] sm:$0xff]
    %v47 = vld [vmem:[%s1 + $0x98] sm:$0xff]
    %v48 = vld [vmem:[%s1 + $0xa0] sm:$0xff]
    %v49 = vld [vmem:[%s1 + $0xa8] sm:$0xff]
    %v50 = vld [vmem:[%s1 + $0xb0] sm:$0xff]
    %v51 = vld [vmem:[%s1 + $0xb8] sm:$0xff]
    %v52 = vld [vmem:[%s1 + $0xc0] sm:$0xff]
    %v53 = vld [vmem:[%s1 + $0xc8] sm:$0xff]
    %v54 = vld [vmem:[%s1 + $0xd0] sm:$0xff]
    %v55 = vld [vmem:[%s1 + $0xd8] sm:$0xff]
    %v56 = vld [vmem:[%s1 + $0xe0] sm:$0xff]
    %v57 = vld [vmem:[%s1 + $0xe8] sm:$0xff]
    %v58 = vld [vmem:[%s1 + $0xf0] sm:$0xff]
    %v59 = vld [vmem:[%s1 + $0xf8] sm:$0xff]
    %v60 = vld [vmem:[%s1 + $0x100] sm:$0xff]
    %v61 = vld [vmem:[%s1 + $0x108] sm:$0xff]
    %v62 = vld [vmem:[%s1 + $0x110] sm:$0xff]
    %v63 = vld [vmem:[%s1 + $0x118] sm:$0xff]
    %v64 = vld [vmem:[%s1 + $0x120] sm:$0xff]
    %v65 = vld [vmem:[%s1 + $0x128] sm:$0xff]
    %v66 = vld [vmem:[%s1 + $0x130] sm:$0xff]
    %v67 = vld [vmem:[%s1 + $0x138] sm:$0xff]
    %v68 = vld [vmem:[%s1 + $0x140] sm:$0xff]
    %v69 = vld [vmem:[%s1 + $0x148] sm:$0xff]
    %v70 = vld [vmem:[%s1 + $0x150] sm:$0xff]
    %v71 = vld [vmem:[%s1 + $0x158] sm:$0xff]
    %v72 = vld [vmem:[%s1 + $0x160] sm:$0xff]
    %v73 = vld [vmem:[%s1 + $0x168] sm:$0xff]
    %v74 = vld [vmem:[%s1 + $0x170] sm:$0xff]
    %v75 = vld [vmem:[%s1 + $0x178] sm:$0xff]
    %v76 = vld [vmem:[%s1 + $0x180] sm:$0xff]
    %v77 = vld [vmem:[%s1 + $0x188] sm:$0xff]
    %v78 = vld [vmem:[%s1 + $0x190] sm:$0xff]
    %v79 = vld [vmem:[%s1 + $0x198] sm:$0xff]
    %v80 = vld [vmem:[%s1 + $0x1a0] sm:$0xff]
    %v81 = vld [vmem:[%s1 + $0x1a8] sm:$0xff]
    %v82 = vld [vmem:[%s1 + $0x1b0] sm:$0xff]
    %v83 = vld [vmem:[%s1 + $0x1b8] sm:$0xff]
    %v84 = vld [vmem:[%s1 + $0x1c0] sm:$0xff]
    %v85 = vld [vmem:[%s1 + $0x1c8] sm:$0xff]
    %v86 = vld [vmem:[%s1 + $0x1d0] sm:$0xff]
    %v87 = vld [vmem:[%s1 + $0x1d8] sm:$0xff]
    %v88 = vld [vmem:[%s1 + $0x1e0] sm:$0xff]
    %v89 = vld [vmem:[%s1 + $0x1e8] sm:$0xff]
    %v90 = vld [vmem:[%s1 + $0x1f0] sm:$0xff]
    %v91 = vld [vmem:[%s1 + $0x1f8] sm:$0xff]
    %v92 = vld [vmem:[%s1 + $0x200] sm:$0xff]
    %v93 = vld [vmem:[%s1 + $0x208] sm:$0xff]
    %v94 = vld [vmem:[%s1 + $0x210] sm:$0xff]
    %v95 = vld [vmem:[%s1 + $0x218] sm:$0xff]
    %v96 = vld [vmem:[%s1 + $0x220] sm:$0xff]
    %v97 = vld [vmem:[%s1 + $0x228] sm:$0xff]
    %v98 = vld [vmem:[%s1 + $0x230] sm:$0xff]
    %v99 = vld [vmem:[%s1 + $0x238] sm:$0xff]
    %v100 = vld [vmem:[%s1 + $0x240] sm:$0xff]
    %v101 = vld [vmem:[%s1 + $0x248] sm:$0xff]
    %v102 = vld [vmem:[%s1 + $0x250] sm:$0xff]
    %v103 = vld [vmem:[%s1 + $0x258] sm:$0xff]
    %v104 = vld [vmem:[%s1 + $0x260] sm:$0xff]
    %v105 = vld [vmem:[%s1 + $0x268] sm:$0xff]
    %v106 = vld [vmem:[%s1 + $0x270] sm:$0xff]
    %v107 = vld [vmem:[%s1 + $0x278] sm:$0xff]
    %v108 = vld [vmem:[%s1 + $0x280] sm:$0xff]
    %v109 = vld [vmem:[%s1 + $0x288] sm:$0xff]
    %v110 = vld [vmem:[%s1 + $0x290] sm:$0xff]
    %v111 = vld [vmem:[%s1 + $0x298] sm:$0xff]
    %v112 = vld [vmem:[%s1 + $0x2a0] sm:$0xff]
    %v113 = vld [vmem:[%s1 + $0x2a8] sm:$0xff]
    %v114 = vld [vmem:[%s1 + $0x2b0] sm:$0xff]
    %v115 = vld [vmem:[%s1 + $0x2b8] sm:$0xff]
    %v116 = vld [vmem:[%s1 + $0x2c0] sm:$0xff]
    %v117 = vld [vmem:[%s1 + $0x2c8] sm:$0xff]
    %v118 = vld [vmem:[%s1 + $0x2d0] sm:$0xff]
    %v119 = vld [vmem:[%s1 + $0x2d8] sm:$0xff]
    %v120 = vld [vmem:[%s1 + $0x2e0] sm:$0xff]
    %v121 = vld [vmem:[%s1 + $0x2e8] sm:$0xff]
    %v122 = vld [vmem:[%s1 + $0x2f0] sm:$0xff]
    %v123 = vld [vmem:[%s1 + $0x2f8] sm:$0xff]
    %v124 = vld [vmem:[%s1 + $0x300] sm:$0xff]
    %v125 = vld [vmem:[%s1 + $0x308] sm:$0xff]
    %v126 = vld [vmem:[%s2] sm:$0x1]
    %v128 = vlaneseq
    %v129 = vshrl.u32 %v128, 7
    %v130 = vsub.s32 0, %v129
    %v131 = vrot.slane %v126, %v130
    %vm133 = vcmask 130048
    %v135 = vsel %vm133, %v27, 0
    %137 = vmatprep.subr.mxu0 0.0
    %138 = vmatpush1.msra.mxu0 %v43
    %139 = vmatprep.subr.mxu0 0.0
    %140 = vmatpush1.msra.mxu0 %v42
    %141 = vmatprep.subr.mxu0 0.0
    %142 = vmatpush1.msra.mxu0 %v41
    %143 = vmatprep.subr.mxu0 0.0
    %144 = vmatpush1.msra.mxu0 %v40
    %145 = vmatprep.subr.mxu0 0.0
    %146 = vmatpush1.msra.mxu0 %v39
    %147 = vmatprep.subr.mxu0 0.0
    %148 = vmatpush1.msra.mxu0 %v38
    %149 = vmatprep.subr.mxu0 0.0
    %150 = vmatpush1.msra.mxu0 %v37
    %151 = vmatprep.subr.mxu0 0.0
    %152 = vmatpush1.msra.mxu0 %v36
    %153 = vmatprep.subr.mxu0 0.0
    %154 = vmatpush1.msra.mxu0 %v35
    %155 = vmatprep.subr.mxu0 0.0
    %156 = vmatpush1.msra.mxu0 %v34
    %157 = vmatprep.subr.mxu0 0.0
    %158 = vmatpush1.msra.mxu0 %v33
    %159 = vmatprep.subr.mxu0 0.0
    %160 = vmatpush1.msra.mxu0 %v32
    %161 = vmatprep.subr.mxu0 0.0
    %162 = vmatpush1.msra.mxu0 %v31
    %163 = vmatprep.subr.mxu0 0.0
    %164 = vmatpush1.msra.mxu0 %v30
    %165 = vmatprep.subr.mxu0 0.0
    %166 = vmatpush1.msra.mxu0 %v29
    %167 = vmatprep.subr.mxu0 0.0
    %168 = vmatpush1.msra.mxu0 %v28
    %169 = vmatprep.subr.mxu0 0.0
    %170 = vmatpush2.msra.mxu0 %v59
    %171 = vmatprep.subr.mxu0 0.0
    %172 = vmatpush2.msra.mxu0 %v58
    %173 = vmatprep.subr.mxu0 0.0
    %174 = vmatpush2.msra.mxu0 %v57
    %175 = vmatprep.subr.mxu0 0.0
    %176 = vmatpush2.msra.mxu0 %v56
    %177 = vmatprep.subr.mxu0 0.0
    %178 = vmatpush2.msra.mxu0 %v55
    %179 = vmatprep.subr.mxu0 0.0
    %180 = vmatpush2.msra.mxu0 %v54
    %181 = vmatprep.subr.mxu0 0.0
    %182 = vmatpush2.msra.mxu0 %v53
    %183 = vmatprep.subr.mxu0 0.0
    %184 = vmatpush2.msra.mxu0 %v52
    %185 = vmatprep.subr.mxu0 0.0
    %186 = vmatpush2.msra.mxu0 %v51
    %187 = vmatprep.subr.mxu0 0.0
    %188 = vmatpush2.msra.mxu0 %v50
    %189 = vmatprep.subr.mxu0 0.0
    %190 = vmatpush2.msra.mxu0 %v49
    %191 = vmatprep.subr.mxu0 0.0
    %192 = vmatpush2.msra.mxu0 %v48
    %193 = vmatprep.subr.mxu0 0.0
    %194 = vmatpush2.msra.mxu0 %v47
    %195 = vmatprep.subr.mxu0 0.0
    %196 = vmatpush2.msra.mxu0 %v46
    %197 = vmatprep.subr.mxu0 0.0
    %198 = vmatpush2.msra.mxu0 %v45
    %199 = vmatprep.subr.mxu0 0.0
    %200 = vmatpush2.msra.mxu0 %v44
    %201 = vmatprep.mubr.f32.mxu0 %v22
    %202 = vmatmul.mubr.f32.gmra.mxu0 %v21
    %v203 = vpop.f32.mrf.mxu0
    %v204 = vadd.f32 %v131, %v203
    %v205 = vpop.f32.mrf.mxu0
    %206 = vdwg.mxu0
    %207 = vmatprep.subr.mxu0 0.0
    %208 = vmatpush1.msra.mxu0 %v75
    %209 = vmatprep.subr.mxu0 0.0
    %210 = vmatpush1.msra.mxu0 %v74
    %211 = vmatprep.subr.mxu0 0.0
    %212 = vmatpush1.msra.mxu0 %v73
    %213 = vmatprep.subr.mxu0 0.0
    %214 = vmatpush1.msra.mxu0 %v72
    %215 = vmatprep.subr.mxu0 0.0
    %216 = vmatpush1.msra.mxu0 %v71
    %217 = vmatprep.subr.mxu0 0.0
    %218 = vmatpush1.msra.mxu0 %v70
    %219 = vmatprep.subr.mxu0 0.0
    %220 = vmatpush1.msra.mxu0 %v69
    %221 = vmatprep.subr.mxu0 0.0
    %222 = vmatpush1.msra.mxu0 %v68
    %223 = vmatprep.subr.mxu0 0.0
    %224 = vmatpush1.msra.mxu0 %v67
    %225 = vmatprep.subr.mxu0 0.0
    %226 = vmatpush1.msra.mxu0 %v66
    %227 = vmatprep.subr.mxu0 0.0
    %228 = vmatpush1.msra.mxu0 %v65
    %229 = vmatprep.subr.mxu0 0.0
    %230 = vmatpush1.msra.mxu0 %v64
    %231 = vmatprep.subr.mxu0 0.0
    %232 = vmatpush1.msra.mxu0 %v63
    %233 = vmatprep.subr.mxu0 0.0
    %234 = vmatpush1.msra.mxu0 %v62
    %235 = vmatprep.subr.mxu0 0.0
    %236 = vmatpush1.msra.mxu0 %v61
    %237 = vmatprep.subr.mxu0 0.0
    %238 = vmatpush1.msra.mxu0 %v60
    %239 = vmatprep.subr.mxu0 0.0
    %240 = vmatpush2.msra.mxu0 %v91
    %241 = vmatprep.subr.mxu0 0.0
    %242 = vmatpush2.msra.mxu0 %v90
    %243 = vmatprep.subr.mxu0 0.0
    %244 = vmatpush2.msra.mxu0 %v89
    %245 = vmatprep.subr.mxu0 0.0
    %246 = vmatpush2.msra.mxu0 %v88
    %247 = vmatprep.subr.mxu0 0.0
    %248 = vmatpush2.msra.mxu0 %v87
    %249 = vmatprep.subr.mxu0 0.0
    %250 = vmatpush2.msra.mxu0 %v86
    %251 = vmatprep.subr.mxu0 0.0
    %252 = vmatpush2.msra.mxu0 %v85
    %253 = vmatprep.subr.mxu0 0.0
    %254 = vmatpush2.msra.mxu0 %v84
    %255 = vmatprep.subr.mxu0 0.0
    %256 = vmatpush2.msra.mxu0 %v83
    %257 = vmatprep.subr.mxu0 0.0
    %258 = vmatpush2.msra.mxu0 %v82
    %259 = vmatprep.subr.mxu0 0.0
    %260 = vmatpush2.msra.mxu0 %v81
    %261 = vmatprep.subr.mxu0 0.0
    %262 = vmatpush2.msra.mxu0 %v80
    %263 = vmatprep.subr.mxu0 0.0
    %264 = vmatpush2.msra.mxu0 %v79
    %265 = vmatprep.subr.mxu0 0.0
    %266 = vmatpush2.msra.mxu0 %v78
    %267 = vmatprep.subr.mxu0 0.0
    %268 = vmatpush2.msra.mxu0 %v77
    %269 = vmatprep.subr.mxu0 0.0
    %270 = vmatpush2.msra.mxu0 %v76
    %271 = vmatprep.mubr.f32.mxu0 %v24
    %272 = vmatmul.mubr.f32.gmra.mxu0 %v23
    %v273 = vpop.f32.mrf.mxu0
    %v274 = vadd.f32 %v204, %v273
    %v275 = vpop.f32.mrf.mxu0
    %276 = vdwg.mxu0
    %277 = vmatprep.subr.mxu0 0.0
    %278 = vmatpush1.msra.mxu0 %v107
    %279 = vmatprep.subr.mxu0 0.0
    %280 = vmatpush1.msra.mxu0 %v106
    %281 = vmatprep.subr.mxu0 0.0
    %282 = vmatpush1.msra.mxu0 %v105
    %283 = vmatprep.subr.mxu0 0.0
    %284 = vmatpush1.msra.mxu0 %v104
    %285 = vmatprep.subr.mxu0 0.0
    %286 = vmatpush1.msra.mxu0 %v103
    %287 = vmatprep.subr.mxu0 0.0
    %288 = vmatpush1.msra.mxu0 %v102
    %289 = vmatprep.subr.mxu0 0.0
    %290 = vmatpush1.msra.mxu0 %v101
    %291 = vmatprep.subr.mxu0 0.0
    %292 = vmatpush1.msra.mxu0 %v100
    %293 = vmatprep.subr.mxu0 0.0
    %294 = vmatpush1.msra.mxu0 %v99
    %295 = vmatprep.subr.mxu0 0.0
    %296 = vmatpush1.msra.mxu0 %v98
    %297 = vmatprep.subr.mxu0 0.0
    %298 = vmatpush1.msra.mxu0 %v97
    %299 = vmatprep.subr.mxu0 0.0
    %300 = vmatpush1.msra.mxu0 %v96
    %301 = vmatprep.subr.mxu0 0.0
    %302 = vmatpush1.msra.mxu0 %v95
    %303 = vmatprep.subr.mxu0 0.0
    %304 = vmatpush1.msra.mxu0 %v94
    %305 = vmatprep.subr.mxu0 0.0
    %306 = vmatpush1.msra.mxu0 %v93
    %307 = vmatprep.subr.mxu0 0.0
    %308 = vmatpush1.msra.mxu0 %v92
    %309 = vmatprep.subr.mxu0 0.0
    %310 = vmatpush2.msra.mxu0 %v123
    %311 = vmatprep.subr.mxu0 0.0
    %312 = vmatpush2.msra.mxu0 %v122
    %313 = vmatprep.subr.mxu0 0.0
    %314 = vmatpush2.msra.mxu0 %v121
    %315 = vmatprep.subr.mxu0 0.0
    %316 = vmatpush2.msra.mxu0 %v120
    %317 = vmatprep.subr.mxu0 0.0
    %318 = vmatpush2.msra.mxu0 %v119
    %319 = vmatprep.subr.mxu0 0.0
    %320 = vmatpush2.msra.mxu0 %v118
    %321 = vmatprep.subr.mxu0 0.0
    %322 = vmatpush2.msra.mxu0 %v117
    %323 = vmatprep.subr.mxu0 0.0
    %324 = vmatpush2.msra.mxu0 %v116
    %325 = vmatprep.subr.mxu0 0.0
    %326 = vmatpush2.msra.mxu0 %v115
    %327 = vmatprep.subr.mxu0 0.0
    %328 = vmatpush2.msra.mxu0 %v114
    %329 = vmatprep.subr.mxu0 0.0
    %330 = vmatpush2.msra.mxu0 %v113
    %331 = vmatprep.subr.mxu0 0.0
    %332 = vmatpush2.msra.mxu0 %v112
    %333 = vmatprep.subr.mxu0 0.0
    %334 = vmatpush2.msra.mxu0 %v111
    %335 = vmatprep.subr.mxu0 0.0
    %336 = vmatpush2.msra.mxu0 %v110
    %337 = vmatprep.subr.mxu0 0.0
    %338 = vmatpush2.msra.mxu0 %v109
    %339 = vmatprep.subr.mxu0 0.0
    %340 = vmatpush2.msra.mxu0 %v108
    %341 = vmatprep.mubr.f32.mxu0 %v26
    %342 = vmatmul.mubr.f32.gmra.mxu0 %v25
    %v343 = vpop.f32.mrf.mxu0
    %v344 = vadd.f32 %v274, %v343
    %v345 = vpop.f32.mrf.mxu0
    %346 = vdwg.mxu0
    %347 = vmatprep.subr.mxu0 0.0
    %348 = vmatpush1.msra.mxu0 0.0
    %349 = vmatprep.subr.mxu0 0.0
    %350 = vmatpush1.msra.mxu0 0.0
    %351 = vmatprep.subr.mxu0 0.0
    %352 = vmatpush1.msra.mxu0 0.0
    %353 = vmatprep.subr.mxu0 0.0
    %354 = vmatpush1.msra.mxu0 0.0
    %355 = vmatprep.subr.mxu0 0.0
    %356 = vmatpush1.msra.mxu0 0.0
    %357 = vmatprep.subr.mxu0 0.0
    %358 = vmatpush1.msra.mxu0 0.0
    %359 = vmatprep.subr.mxu0 0.0
    %360 = vmatpush1.msra.mxu0 0.0
    %361 = vmatprep.subr.mxu0 0.0
    %362 = vmatpush1.msra.mxu0 0.0
    %363 = vmatprep.subr.mxu0 0.0
    %364 = vmatpush1.msra.mxu0 0.0
    %365 = vmatprep.subr.mxu0 0.0
    %366 = vmatpush1.msra.mxu0 0.0
    %367 = vmatprep.subr.mxu0 0.0
    %368 = vmatpush1.msra.mxu0 0.0
    %369 = vmatprep.subr.mxu0 0.0
    %370 = vmatpush1.msra.mxu0 0.0
    %371 = vmatprep.subr.mxu0 0.0
    %372 = vmatpush1.msra.mxu0 0.0
    %373 = vmatprep.subr.mxu0 0.0
    %374 = vmatpush1.msra.mxu0 0.0
    %375 = vmatprep.subr.mxu0 0.0
    %376 = vmatpush1.msra.mxu0 %v125
    %377 = vmatprep.subr.mxu0 0.0
    %378 = vmatpush1.msra.mxu0 %v124
    %379 = vmatprep.subr.mxu0 0.0
    %380 = vmatpush2.msra.mxu0 0.0
    %381 = vmatprep.subr.mxu0 0.0
    %382 = vmatpush2.msra.mxu0 0.0
    %383 = vmatprep.subr.mxu0 0.0
    %384 = vmatpush2.msra.mxu0 0.0
    %385 = vmatprep.subr.mxu0 0.0
    %386 = vmatpush2.msra.mxu0 0.0
    %387 = vmatprep.subr.mxu0 0.0
    %388 = vmatpush2.msra.mxu0 0.0
    %389 = vmatprep.subr.mxu0 0.0
    %390 = vmatpush2.msra.mxu0 0.0
    %391 = vmatprep.subr.mxu0 0.0
    %392 = vmatpush2.msra.mxu0 0.0
    %393 = vmatprep.subr.mxu0 0.0
    %394 = vmatpush2.msra.mxu0 0.0
    %395 = vmatprep.subr.mxu0 0.0
    %396 = vmatpush2.msra.mxu0 0.0
    %397 = vmatprep.subr.mxu0 0.0
    %398 = vmatpush2.msra.mxu0 0.0
    %399 = vmatprep.subr.mxu0 0.0
    %400 = vmatpush2.msra.mxu0 0.0
    %401 = vmatprep.subr.mxu0 0.0
    %402 = vmatpush2.msra.mxu0 0.0
    %403 = vmatprep.subr.mxu0 0.0
    %404 = vmatpush2.msra.mxu0 0.0
    %405 = vmatprep.subr.mxu0 0.0
    %406 = vmatpush2.msra.mxu0 0.0
    %407 = vmatprep.subr.mxu0 0.0
    %408 = vmatpush2.msra.mxu0 0.0
    %409 = vmatprep.subr.mxu0 0.0
    %410 = vmatpush2.msra.mxu0 0.0
    %411 = vmatprep.mubr.f32.mxu0 0.0
    %412 = vmatmul.mubr.f32.gmra.mxu0 %v135
    %v413 = vpop.f32.mrf.mxu0
    %v414 = vadd.f32 %v344, %v413
    %v415 = vpop.f32.mrf.mxu0
    %416 = vdwg.mxu0
    %v417 = vld [vmem:[%s3] sm:$0xff]
    %v418 = vld [vmem:[%s3 + $0x8] sm:$0xff]
    %v419 = vld [vmem:[%s3 + $0x10] sm:$0xff]
    %v420 = vld [vmem:[%s3 + $0x18] sm:$0xff]
    %v421 = vld [vmem:[%s3 + $0x20] sm:$0xff]
    %v422 = vld [vmem:[%s3 + $0x28] sm:$0xff]
    %v423 = vld [vmem:[%s3 + $0x30] sm:$0xff]
    %v424 = vld [vmem:[%s3 + $0x38] sm:$0xff]
    %v425 = vld [vmem:[%s3 + $0x40] sm:$0xff]
    %v426 = vld [vmem:[%s3 + $0x48] sm:$0xff]
    %v427 = vld [vmem:[%s3 + $0x50] sm:$0xff]
    %v428 = vld [vmem:[%s3 + $0x58] sm:$0xff]
    %v429 = vld [vmem:[%s3 + $0x60] sm:$0xff]
    %v430 = vld [vmem:[%s3 + $0x68] sm:$0xff]
    %v431 = vld [vmem:[%s3 + $0x70] sm:$0xff]
    %v432 = vld [vmem:[%s3 + $0x78] sm:$0xff]
    %v433 = vld [vmem:[%s3 + $0x80] sm:$0xff]
    %v434 = vld [vmem:[%s3 + $0x88] sm:$0xff]
    %v435 = vld [vmem:[%s3 + $0x90] sm:$0xff]
    %v436 = vld [vmem:[%s3 + $0x98] sm:$0xff]
    %v437 = vld [vmem:[%s3 + $0xa0] sm:$0xff]
    %v438 = vld [vmem:[%s3 + $0xa8] sm:$0xff]
    %v439 = vld [vmem:[%s3 + $0xb0] sm:$0xff]
    %v440 = vld [vmem:[%s3 + $0xb8] sm:$0xff]
    %v441 = vld [vmem:[%s3 + $0xc0] sm:$0xff]
    %v442 = vld [vmem:[%s3 + $0xc8] sm:$0xff]
    %v443 = vld [vmem:[%s3 + $0xd0] sm:$0xff]
    %v444 = vld [vmem:[%s3 + $0xd8] sm:$0xff]
    %v445 = vld [vmem:[%s3 + $0xe0] sm:$0xff]
    %v446 = vld [vmem:[%s3 + $0xe8] sm:$0xff]
    %v447 = vld [vmem:[%s3 + $0xf0] sm:$0xff]
    %v448 = vld [vmem:[%s3 + $0xf8] sm:$0xff]
    %v449 = vld [vmem:[%s3 + $0x100] sm:$0xff]
    %v450 = vld [vmem:[%s3 + $0x108] sm:$0xff]
    %v451 = vld [vmem:[%s3 + $0x110] sm:$0xff]
    %v452 = vld [vmem:[%s3 + $0x118] sm:$0xff]
    %v453 = vld [vmem:[%s3 + $0x120] sm:$0xff]
    %v454 = vld [vmem:[%s3 + $0x128] sm:$0xff]
    %v455 = vld [vmem:[%s3 + $0x130] sm:$0xff]
    %v456 = vld [vmem:[%s3 + $0x138] sm:$0xff]
    %v457 = vld [vmem:[%s3 + $0x140] sm:$0xff]
    %v458 = vld [vmem:[%s3 + $0x148] sm:$0xff]
    %v459 = vld [vmem:[%s3 + $0x150] sm:$0xff]
    %v460 = vld [vmem:[%s3 + $0x158] sm:$0xff]
    %v461 = vld [vmem:[%s3 + $0x160] sm:$0xff]
    %v462 = vld [vmem:[%s3 + $0x168] sm:$0xff]
    %v463 = vld [vmem:[%s3 + $0x170] sm:$0xff]
    %v464 = vld [vmem:[%s3 + $0x178] sm:$0xff]
    %v465 = vld [vmem:[%s3 + $0x180] sm:$0xff]
    %v466 = vld [vmem:[%s3 + $0x188] sm:$0xff]
    %v467 = vld [vmem:[%s3 + $0x190] sm:$0xff]
    %v468 = vld [vmem:[%s3 + $0x198] sm:$0xff]
    %v469 = vld [vmem:[%s3 + $0x1a0] sm:$0xff]
    %v470 = vld [vmem:[%s3 + $0x1a8] sm:$0xff]
    %v471 = vld [vmem:[%s3 + $0x1b0] sm:$0xff]
    %v472 = vld [vmem:[%s3 + $0x1b8] sm:$0xff]
    %v473 = vld [vmem:[%s3 + $0x1c0] sm:$0xff]
    %v474 = vld [vmem:[%s3 + $0x1c8] sm:$0xff]
    %v475 = vld [vmem:[%s3 + $0x1d0] sm:$0xff]
    %v476 = vld [vmem:[%s3 + $0x1d8] sm:$0xff]
    %v477 = vld [vmem:[%s3 + $0x1e0] sm:$0xff]
    %v478 = vld [vmem:[%s3 + $0x1e8] sm:$0xff]
    %v479 = vld [vmem:[%s3 + $0x1f0] sm:$0xff]
    %v480 = vld [vmem:[%s3 + $0x1f8] sm:$0xff]
    %v481 = vld [vmem:[%s3 + $0x200] sm:$0xff]
    %v482 = vld [vmem:[%s3 + $0x208] sm:$0xff]
    %v483 = vld [vmem:[%s3 + $0x210] sm:$0xff]
    %v484 = vld [vmem:[%s3 + $0x218] sm:$0xff]
    %v485 = vld [vmem:[%s3 + $0x220] sm:$0xff]
    %v486 = vld [vmem:[%s3 + $0x228] sm:$0xff]
    %v487 = vld [vmem:[%s3 + $0x230] sm:$0xff]
    %v488 = vld [vmem:[%s3 + $0x238] sm:$0xff]
    %v489 = vld [vmem:[%s3 + $0x240] sm:$0xff]
    %v490 = vld [vmem:[%s3 + $0x248] sm:$0xff]
    %v491 = vld [vmem:[%s3 + $0x250] sm:$0xff]
    %v492 = vld [vmem:[%s3 + $0x258] sm:$0xff]
    %v493 = vld [vmem:[%s3 + $0x260] sm:$0xff]
    %v494 = vld [vmem:[%s3 + $0x268] sm:$0xff]
    %v495 = vld [vmem:[%s3 + $0x270] sm:$0xff]
    %v496 = vld [vmem:[%s3 + $0x278] sm:$0xff]
    %v497 = vld [vmem:[%s3 + $0x280] sm:$0xff]
    %v498 = vld [vmem:[%s3 + $0x288] sm:$0xff]
    %v499 = vld [vmem:[%s3 + $0x290] sm:$0xff]
    %v500 = vld [vmem:[%s3 + $0x298] sm:$0xff]
    %v501 = vld [vmem:[%s3 + $0x2a0] sm:$0xff]
    %v502 = vld [vmem:[%s3 + $0x2a8] sm:$0xff]
    %v503 = vld [vmem:[%s3 + $0x2b0] sm:$0xff]
    %v504 = vld [vmem:[%s3 + $0x2b8] sm:$0xff]
    %v505 = vld [vmem:[%s3 + $0x2c0] sm:$0xff]
    %v506 = vld [vmem:[%s3 + $0x2c8] sm:$0xff]
    %v507 = vld [vmem:[%s3 + $0x2d0] sm:$0xff]
    %v508 = vld [vmem:[%s3 + $0x2d8] sm:$0xff]
    %v509 = vld [vmem:[%s3 + $0x2e0] sm:$0xff]
    %v510 = vld [vmem:[%s3 + $0x2e8] sm:$0xff]
    %v511 = vld [vmem:[%s3 + $0x2f0] sm:$0xff]
    %v512 = vld [vmem:[%s3 + $0x2f8] sm:$0xff]
    %v513 = vld [vmem:[%s3 + $0x300] sm:$0xff]
    %v514 = vld [vmem:[%s3 + $0x308] sm:$0xff]
    %v515 = vld [vmem:[%s3 + $0x310] sm:$0xff]
    %v516 = vld [vmem:[%s3 + $0x318] sm:$0xff]
    %v517 = vld [vmem:[%s3 + $0x320] sm:$0xff]
    %v518 = vld [vmem:[%s3 + $0x328] sm:$0xff]
    %v519 = vld [vmem:[%s3 + $0x330] sm:$0xff]
    %v520 = vld [vmem:[%s3 + $0x338] sm:$0xff]
    %v521 = vld [vmem:[%s3 + $0x340] sm:$0xff]
    %v522 = vld [vmem:[%s3 + $0x348] sm:$0xff]
    %v523 = vld [vmem:[%s3 + $0x350] sm:$0xff]
    %v524 = vld [vmem:[%s3 + $0x358] sm:$0xff]
    %v525 = vld [vmem:[%s3 + $0x360] sm:$0xff]
    %v526 = vld [vmem:[%s3 + $0x368] sm:$0xff]
    %v527 = vld [vmem:[%s3 + $0x370] sm:$0xff]
    %v528 = vld [vmem:[%s3 + $0x378] sm:$0xff]
    %v529 = vld [vmem:[%s4] sm:$0x7f]
    %v531 = vlaneseq
    %v532 = vshrl.u32 %v531, 7
    %v533 = vsub.s32 0, %v532
    %v534 = vrot.slane %v529, %v533
    %v535 = vlaneseq
    %v536 = vshrl.u32 %v535, 7
    %v537 = vsub.s32 1, %v536
    %v538 = vrot.slane %v529, %v537
    %v539 = vlaneseq
    %v540 = vshrl.u32 %v539, 7
    %v541 = vsub.s32 2, %v540
    %v542 = vrot.slane %v529, %v541
    %v543 = vlaneseq
    %v544 = vshrl.u32 %v543, 7
    %v545 = vsub.s32 3, %v544
    %v546 = vrot.slane %v529, %v545
    %v547 = vlaneseq
    %v548 = vshrl.u32 %v547, 7
    %v549 = vsub.s32 4, %v548
    %v550 = vrot.slane %v529, %v549
    %v551 = vlaneseq
    %v552 = vshrl.u32 %v551, 7
    %v553 = vsub.s32 5, %v552
    %v554 = vrot.slane %v529, %v553
    %v555 = vlaneseq
    %v556 = vshrl.u32 %v555, 7
    %v557 = vsub.s32 6, %v556
    %v558 = vrot.slane %v529, %v557
    %566 = vmatprep.subr.mxu0 %v523
    %567 = vmatpush1.msra.mxu0 %v522
    %568 = vmatprep.subr.mxu0 %v516
    %569 = vmatpush1.msra.mxu0 %v515
    %570 = vmatprep.subr.mxu0 %v509
    %571 = vmatpush1.msra.mxu0 %v508
    %572 = vmatprep.subr.mxu0 %v502
    %573 = vmatpush1.msra.mxu0 %v501
    %574 = vmatprep.subr.mxu0 %v495
    %575 = vmatpush1.msra.mxu0 %v494
    %576 = vmatprep.subr.mxu0 %v488
    %577 = vmatpush1.msra.mxu0 %v487
    %578 = vmatprep.subr.mxu0 %v481
    %579 = vmatpush1.msra.mxu0 %v480
    %580 = vmatprep.subr.mxu0 %v474
    %581 = vmatpush1.msra.mxu0 %v473
    %582 = vmatprep.subr.mxu0 %v467
    %583 = vmatpush1.msra.mxu0 %v466
    %584 = vmatprep.subr.mxu0 %v460
    %585 = vmatpush1.msra.mxu0 %v459
    %586 = vmatprep.subr.mxu0 %v453
    %587 = vmatpush1.msra.mxu0 %v452
    %588 = vmatprep.subr.mxu0 %v446
    %589 = vmatpush1.msra.mxu0 %v445
    %590 = vmatprep.subr.mxu0 %v439
    %591 = vmatpush1.msra.mxu0 %v438
    %592 = vmatprep.subr.mxu0 %v432
    %593 = vmatpush1.msra.mxu0 %v431
    %594 = vmatprep.subr.mxu0 %v425
    %595 = vmatpush1.msra.mxu0 %v424
    %596 = vmatprep.subr.mxu0 %v418
    %597 = vmatpush1.msra.mxu0 %v417
    %598 = vmatprep.subr.mxu0 0.0
    %599 = vmatpush2.msra.mxu0 0.0
    %600 = vmatprep.subr.mxu0 0.0
    %601 = vmatpush2.msra.mxu0 0.0
    %602 = vmatprep.subr.mxu0 0.0
    %603 = vmatpush2.msra.mxu0 0.0
    %604 = vmatprep.subr.mxu0 0.0
    %605 = vmatpush2.msra.mxu0 0.0
    %606 = vmatprep.subr.mxu0 0.0
    %607 = vmatpush2.msra.mxu0 0.0
    %608 = vmatprep.subr.mxu0 0.0
    %609 = vmatpush2.msra.mxu0 0.0
    %610 = vmatprep.subr.mxu0 0.0
    %611 = vmatpush2.msra.mxu0 0.0
    %612 = vmatprep.subr.mxu0 0.0
    %613 = vmatpush2.msra.mxu0 0.0
    %614 = vmatprep.subr.mxu0 0.0
    %615 = vmatpush2.msra.mxu0 0.0
    %616 = vmatprep.subr.mxu0 0.0
    %617 = vmatpush2.msra.mxu0 0.0
    %618 = vmatprep.subr.mxu0 0.0
    %619 = vmatpush2.msra.mxu0 0.0
    %620 = vmatprep.subr.mxu0 0.0
    %621 = vmatpush2.msra.mxu0 0.0
    %622 = vmatprep.subr.mxu0 0.0
    %623 = vmatpush2.msra.mxu0 0.0
    %624 = vmatprep.subr.mxu0 0.0
    %625 = vmatpush2.msra.mxu0 0.0
    %626 = vmatprep.subr.mxu0 0.0
    %627 = vmatpush2.msra.mxu0 0.0
    %628 = vmatprep.subr.mxu0 0.0
    %629 = vmatpush2.msra.mxu0 0.0
    %630 = vmatprep.mubr.f32.mxu0 0.0
    %631 = vmatmul.mubr.f32.gmra.mxu0 %v414
    %v632 = vpop.f32.mrf.mxu0
    %v633 = vadd.f32 %v534, %v632
    %v634 = vpop.f32.mrf.mxu0
    %v635 = vadd.f32 %v538, %v634
    %636 = vdwg.mxu0
    %637 = vmatprep.subr.mxu0 %v525
    %638 = vmatpush1.msra.mxu0 %v524
    %639 = vmatprep.subr.mxu0 %v518
    %640 = vmatpush1.msra.mxu0 %v517
    %641 = vmatprep.subr.mxu0 %v511
    %642 = vmatpush1.msra.mxu0 %v510
    %643 = vmatprep.subr.mxu0 %v504
    %644 = vmatpush1.msra.mxu0 %v503
    %645 = vmatprep.subr.mxu0 %v497
    %646 = vmatpush1.msra.mxu0 %v496
    %647 = vmatprep.subr.mxu0 %v490
    %648 = vmatpush1.msra.mxu0 %v489
    %649 = vmatprep.subr.mxu0 %v483
    %650 = vmatpush1.msra.mxu0 %v482
    %651 = vmatprep.subr.mxu0 %v476
    %652 = vmatpush1.msra.mxu0 %v475
    %653 = vmatprep.subr.mxu0 %v469
    %654 = vmatpush1.msra.mxu0 %v468
    %655 = vmatprep.subr.mxu0 %v462
    %656 = vmatpush1.msra.mxu0 %v461
    %657 = vmatprep.subr.mxu0 %v455
    %658 = vmatpush1.msra.mxu0 %v454
    %659 = vmatprep.subr.mxu0 %v448
    %660 = vmatpush1.msra.mxu0 %v447
    %661 = vmatprep.subr.mxu0 %v441
    %662 = vmatpush1.msra.mxu0 %v440
    %663 = vmatprep.subr.mxu0 %v434
    %664 = vmatpush1.msra.mxu0 %v433
    %665 = vmatprep.subr.mxu0 %v427
    %666 = vmatpush1.msra.mxu0 %v426
    %667 = vmatprep.subr.mxu0 %v420
    %668 = vmatpush1.msra.mxu0 %v419
    %669 = vmatprep.subr.mxu0 0.0
    %670 = vmatpush2.msra.mxu0 0.0
    %671 = vmatprep.subr.mxu0 0.0
    %672 = vmatpush2.msra.mxu0 0.0
    %673 = vmatprep.subr.mxu0 0.0
    %674 = vmatpush2.msra.mxu0 0.0
    %675 = vmatprep.subr.mxu0 0.0
    %676 = vmatpush2.msra.mxu0 0.0
    %677 = vmatprep.subr.mxu0 0.0
    %678 = vmatpush2.msra.mxu0 0.0
    %679 = vmatprep.subr.mxu0 0.0
    %680 = vmatpush2.msra.mxu0 0.0
    %681 = vmatprep.subr.mxu0 0.0
    %682 = vmatpush2.msra.mxu0 0.0
    %683 = vmatprep.subr.mxu0 0.0
    %684 = vmatpush2.msra.mxu0 0.0
    %685 = vmatprep.subr.mxu0 0.0
    %686 = vmatpush2.msra.mxu0 0.0
    %687 = vmatprep.subr.mxu0 0.0
    %688 = vmatpush2.msra.mxu0 0.0
    %689 = vmatprep.subr.mxu0 0.0
    %690 = vmatpush2.msra.mxu0 0.0
    %691 = vmatprep.subr.mxu0 0.0
    %692 = vmatpush2.msra.mxu0 0.0
    %693 = vmatprep.subr.mxu0 0.0
    %694 = vmatpush2.msra.mxu0 0.0
    %695 = vmatprep.subr.mxu0 0.0
    %696 = vmatpush2.msra.mxu0 0.0
    %697 = vmatprep.subr.mxu0 0.0
    %698 = vmatpush2.msra.mxu0 0.0
    %699 = vmatprep.subr.mxu0 0.0
    %700 = vmatpush2.msra.mxu0 0.0
    %701 = vmatprep.mubr.f32.mxu0 0.0
    %702 = vmatmul.mubr.f32.gmra.mxu0 %v414
    %v703 = vpop.f32.mrf.mxu0
    %v704 = vadd.f32 %v542, %v703
    %v705 = vpop.f32.mrf.mxu0
    %v706 = vadd.f32 %v546, %v705
    %707 = vdwg.mxu0
    %708 = vmatprep.subr.mxu0 %v527
    %709 = vmatpush1.msra.mxu0 %v526
    %710 = vmatprep.subr.mxu0 %v520
    %711 = vmatpush1.msra.mxu0 %v519
    %712 = vmatprep.subr.mxu0 %v513
    %713 = vmatpush1.msra.mxu0 %v512
    %714 = vmatprep.subr.mxu0 %v506
    %715 = vmatpush1.msra.mxu0 %v505
    %716 = vmatprep.subr.mxu0 %v499
    %717 = vmatpush1.msra.mxu0 %v498
    %718 = vmatprep.subr.mxu0 %v492
    %719 = vmatpush1.msra.mxu0 %v491
    %720 = vmatprep.subr.mxu0 %v485
    %721 = vmatpush1.msra.mxu0 %v484
    %722 = vmatprep.subr.mxu0 %v478
    %723 = vmatpush1.msra.mxu0 %v477
    %724 = vmatprep.subr.mxu0 %v471
    %725 = vmatpush1.msra.mxu0 %v470
    %726 = vmatprep.subr.mxu0 %v464
    %727 = vmatpush1.msra.mxu0 %v463
    %728 = vmatprep.subr.mxu0 %v457
    %729 = vmatpush1.msra.mxu0 %v456
    %730 = vmatprep.subr.mxu0 %v450
    %731 = vmatpush1.msra.mxu0 %v449
    %732 = vmatprep.subr.mxu0 %v443
    %733 = vmatpush1.msra.mxu0 %v442
    %734 = vmatprep.subr.mxu0 %v436
    %735 = vmatpush1.msra.mxu0 %v435
    %736 = vmatprep.subr.mxu0 %v429
    %737 = vmatpush1.msra.mxu0 %v428
    %738 = vmatprep.subr.mxu0 %v422
    %739 = vmatpush1.msra.mxu0 %v421
    %740 = vmatprep.subr.mxu0 0.0
    %741 = vmatpush2.msra.mxu0 0.0
    %742 = vmatprep.subr.mxu0 0.0
    %743 = vmatpush2.msra.mxu0 0.0
    %744 = vmatprep.subr.mxu0 0.0
    %745 = vmatpush2.msra.mxu0 0.0
    %746 = vmatprep.subr.mxu0 0.0
    %747 = vmatpush2.msra.mxu0 0.0
    %748 = vmatprep.subr.mxu0 0.0
    %749 = vmatpush2.msra.mxu0 0.0
    %750 = vmatprep.subr.mxu0 0.0
    %751 = vmatpush2.msra.mxu0 0.0
    %752 = vmatprep.subr.mxu0 0.0
    %753 = vmatpush2.msra.mxu0 0.0
    %754 = vmatprep.subr.mxu0 0.0
    %755 = vmatpush2.msra.mxu0 0.0
    %756 = vmatprep.subr.mxu0 0.0
    %757 = vmatpush2.msra.mxu0 0.0
    %758 = vmatprep.subr.mxu0 0.0
    %759 = vmatpush2.msra.mxu0 0.0
    %760 = vmatprep.subr.mxu0 0.0
    %761 = vmatpush2.msra.mxu0 0.0
    %762 = vmatprep.subr.mxu0 0.0
    %763 = vmatpush2.msra.mxu0 0.0
    %764 = vmatprep.subr.mxu0 0.0
    %765 = vmatpush2.msra.mxu0 0.0
    %766 = vmatprep.subr.mxu0 0.0
    %767 = vmatpush2.msra.mxu0 0.0
    %768 = vmatprep.subr.mxu0 0.0
    %769 = vmatpush2.msra.mxu0 0.0
    %770 = vmatprep.subr.mxu0 0.0
    %771 = vmatpush2.msra.mxu0 0.0
    %772 = vmatprep.mubr.f32.mxu0 0.0
    %773 = vmatmul.mubr.f32.gmra.mxu0 %v414
    %v774 = vpop.f32.mrf.mxu0
    %v775 = vadd.f32 %v550, %v774
    %v776 = vpop.f32.mrf.mxu0
    %v777 = vadd.f32 %v554, %v776
    %778 = vdwg.mxu0
    %779 = vmatprep.subr.mxu0 0.0
    %780 = vmatpush1.msra.mxu0 %v528
    %781 = vmatprep.subr.mxu0 0.0
    %782 = vmatpush1.msra.mxu0 %v521
    %783 = vmatprep.subr.mxu0 0.0
    %784 = vmatpush1.msra.mxu0 %v514
    %785 = vmatprep.subr.mxu0 0.0
    %786 = vmatpush1.msra.mxu0 %v507
    %787 = vmatprep.subr.mxu0 0.0
    %788 = vmatpush1.msra.mxu0 %v500
    %789 = vmatprep.subr.mxu0 0.0
    %790 = vmatpush1.msra.mxu0 %v493
    %791 = vmatprep.subr.mxu0 0.0
    %792 = vmatpush1.msra.mxu0 %v486
    %793 = vmatprep.subr.mxu0 0.0
    %794 = vmatpush1.msra.mxu0 %v479
    %795 = vmatprep.subr.mxu0 0.0
    %796 = vmatpush1.msra.mxu0 %v472
    %797 = vmatprep.subr.mxu0 0.0
    %798 = vmatpush1.msra.mxu0 %v465
    %799 = vmatprep.subr.mxu0 0.0
    %800 = vmatpush1.msra.mxu0 %v458
    %801 = vmatprep.subr.mxu0 0.0
    %802 = vmatpush1.msra.mxu0 %v451
    %803 = vmatprep.subr.mxu0 0.0
    %804 = vmatpush1.msra.mxu0 %v444
    %805 = vmatprep.subr.mxu0 0.0
    %806 = vmatpush1.msra.mxu0 %v437
    %807 = vmatprep.subr.mxu0 0.0
    %808 = vmatpush1.msra.mxu0 %v430
    %809 = vmatprep.subr.mxu0 0.0
    %810 = vmatpush1.msra.mxu0 %v423
    %811 = vmatprep.subr.mxu0 0.0
    %812 = vmatpush2.msra.mxu0 0.0
    %813 = vmatprep.subr.mxu0 0.0
    %814 = vmatpush2.msra.mxu0 0.0
    %815 = vmatprep.subr.mxu0 0.0
    %816 = vmatpush2.msra.mxu0 0.0
    %817 = vmatprep.subr.mxu0 0.0
    %818 = vmatpush2.msra.mxu0 0.0
    %819 = vmatprep.subr.mxu0 0.0
    %820 = vmatpush2.msra.mxu0 0.0
    %821 = vmatprep.subr.mxu0 0.0
    %822 = vmatpush2.msra.mxu0 0.0
    %823 = vmatprep.subr.mxu0 0.0
    %824 = vmatpush2.msra.mxu0 0.0
    %825 = vmatprep.subr.mxu0 0.0
    %826 = vmatpush2.msra.mxu0 0.0
    %827 = vmatprep.subr.mxu0 0.0
    %828 = vmatpush2.msra.mxu0 0.0
    %829 = vmatprep.subr.mxu0 0.0
    %830 = vmatpush2.msra.mxu0 0.0
    %831 = vmatprep.subr.mxu0 0.0
    %832 = vmatpush2.msra.mxu0 0.0
    %833 = vmatprep.subr.mxu0 0.0
    %834 = vmatpush2.msra.mxu0 0.0
    %835 = vmatprep.subr.mxu0 0.0
    %836 = vmatpush2.msra.mxu0 0.0
    %837 = vmatprep.subr.mxu0 0.0
    %838 = vmatpush2.msra.mxu0 0.0
    %839 = vmatprep.subr.mxu0 0.0
    %840 = vmatpush2.msra.mxu0 0.0
    %841 = vmatprep.subr.mxu0 0.0
    %842 = vmatpush2.msra.mxu0 0.0
    %843 = vmatprep.mubr.f32.mxu0 0.0
    %844 = vmatmul.mubr.f32.gmra.mxu0 %v414
    %v845 = vpop.f32.mrf.mxu0
    %v846 = vadd.f32 %v558, %v845
    %v847 = vpop.f32.mrf.mxu0
    %848 = vdwg.mxu0
    %v849 = vxor.u32 %v633, 2147483648
    %v850 = vxor.u32 %v635, 2147483648
    %v851 = vxor.u32 %v704, 2147483648
    %v852 = vxor.u32 %v706, 2147483648
    %v853 = vxor.u32 %v775, 2147483648
    %v854 = vxor.u32 %v777, 2147483648
    %v855 = vxor.u32 %v846, 2147483648
    %v856 = vmul.f32 %v849, 1.442695
    %v857 = vpow.pop %v856
    %v858 = vmul.f32 %v850, 1.442695
    %v859 = vpow.pop %v858
    %v860 = vmul.f32 %v851, 1.442695
    %v861 = vpow.pop %v860
    %v862 = vmul.f32 %v852, 1.442695
    %v863 = vpow.pop %v862
    %v864 = vmul.f32 %v853, 1.442695
    %v865 = vpow.pop %v864
    %v866 = vmul.f32 %v854, 1.442695
    %v867 = vpow.pop %v866
    %v868 = vmul.f32 %v855, 1.442695
    %v869 = vpow.pop %v868
    %v870 = vadd.f32 %v857, 1.0
    %v871 = vadd.f32 %v859, 1.0
    %v872 = vadd.f32 %v861, 1.0
    %v873 = vadd.f32 %v863, 1.0
    %v874 = vadd.f32 %v865, 1.0
    %v875 = vadd.f32 %v867, 1.0
    %v876 = vadd.f32 %v869, 1.0
    %v877 = vrcp.pop %v870
    %v878 = vmul.f32 1.0, %v877
    %v879 = vrcp.pop %v871
    %v880 = vmul.f32 1.0, %v879
    %v881 = vrcp.pop %v872
    %v882 = vmul.f32 1.0, %v881
    %v883 = vrcp.pop %v873
    %v884 = vmul.f32 1.0, %v883
    %v885 = vrcp.pop %v874
    %v886 = vmul.f32 1.0, %v885
    %v887 = vrcp.pop %v875
    %v888 = vmul.f32 1.0, %v887
    %v889 = vrcp.pop %v876
    %v890 = vmul.f32 1.0, %v889
    %891 = vst [vmem:[#allocation2] sm:$0xff] %v878
    %892 = vst [vmem:[#allocation2 + $0x8] sm:$0xff] %v880
    %893 = vst [vmem:[#allocation2 + $0x10] sm:$0xff] %v882
    %894 = vst [vmem:[#allocation2 + $0x18] sm:$0xff] %v884
    %895 = vst [vmem:[#allocation2 + $0x20] sm:$0xff] %v886
    %896 = vst [vmem:[#allocation2 + $0x28] sm:$0xff] %v888
    %897 = vst.msk [vmem:[#allocation2 + $0x30] sm:$0xff] %vm133, %v890
    // Predicated region
    $region22: #{deep_linear_autoencoder.1} parent=1 // pred_check
      _
    $region23: #{deep_linear_autoencoder.1} parent=1 // pred_check_branch
      %899 = sbr.rel (0) target = $region25
    $region24: #{deep_linear_autoencoder.1} parent=1 // pred_region
      %s901 = ssub.s32 896, 896
      %902 = vsyncadd [#allocation3], %s901
      %s904 = sshll.u32 [#allocation2], 4
      %s905 = int_to_ptr.vmem [resolvable:$true] %s904
      %907 = dma.vmem_to_hbm [thread:$0]  %s905, 896, %s5, [#allocation3]
    $region25: #{deep_linear_autoencoder.1} parent=1 // pred_fallthru
      _
    // Predicated region
    $region26: #{deep_linear_autoencoder.1} parent=1 // pred_check
      _
    $region27: #{deep_linear_autoencoder.1} parent=1 // pred_check_branch
      %909 = sbr.rel (0) target = $region29
    $region28: #{deep_linear_autoencoder.1} parent=1 // pred_region
      %910 = dma.done [#allocation3], 896
    $region29: #{deep_linear_autoencoder.1} parent=1 // pred_fallthru
      _
    %911 = vsyncpa [#allocation3], 1

</llo_original>
